<compile_context>
chip_gen: v7x
topology: tpu7x:2x2x1
jax: 0.10.0
libtpu: 0.0.40
codegen_flags: <defaults>
</compile_context>

<pallas_src>
import functools
import math

import jax
import jax.numpy as jnp
from jax.experimental import pallas as pl
from jax.experimental.pallas import tpu as pltpu


def _cdiv(a, b):
    return -(-a // b)


def _rup(a, m):
    return _cdiv(a, m) * m


def _lcm(a, b):
    return a * b // math.gcd(a, b)


def _focal_loss_kernel(clf_p_ref, clf_code_ref, loc_p_ref, loc_t_ref, loc_code_ref,
                       out_ref, acc_clf, acc_loc, acc_pos,
                       *, alpha, gamma, clf_rows, loc_rows):
    s = pl.program_id(0)
    i = pl.program_id(1)
    n_steps = pl.num_programs(1)
    block = s * n_steps + i          # un-clamped logical block index

    @pl.when(i == 0)
    def _init():
        acc_clf[...] = jnp.zeros_like(acc_clf)
        acc_loc[...] = jnp.zeros_like(acc_loc)
        acc_pos[...] = jnp.zeros_like(acc_pos)

    rc = clf_p_ref.shape[0]
    rl = loc_p_ref.shape[0]

    # ---------------- classification: focal binary cross entropy ----------
    x = clf_p_ref[...]                                   # (rc,128) f32 probs
    code = clf_code_ref[...].astype(jnp.int32)           # 1 onehot, 0 neg, -1 ignore
    onehot = code > 0
    # Rows past the end of the packed arrays (partial edge blocks) hold
    # garbage -> positional mask with a compile-time limit.
    row_ok = jax.lax.broadcasted_iota(jnp.int32, (rc, 128), 0) < (clf_rows - block * rc)
    keep = jnp.logical_and(code >= 0, row_ok)
    pt = jnp.where(onehot, x, 1.0 - x)
    log_pt = jnp.maximum(jnp.log(pt), -100.0)            # PyTorch BCE log clamp
    w = jnp.where(onehot, alpha, 1.0 - alpha)
    one_m_pt = 1.0 - pt
    if gamma == 2.0:                                     # fast path: VPU square
        mod = one_m_pt * one_m_pt
    elif gamma == 1.0:
        mod = one_m_pt
    elif gamma == 0.0:
        mod = jnp.ones_like(one_m_pt)
    else:
        mod = one_m_pt ** gamma
    contrib = jnp.where(keep, (w * mod) * log_pt, 0.0)   # select kills tail NaNs
    acc_clf[...] -= contrib.reshape(-1, 8, 128).sum(axis=0)   # BCE = -log(pt)

    # ---------------- localization: smooth L1 over positive anchors -------
    d = loc_p_ref[...] - loc_t_ref[...]                  # (rl,128)
    ad = jnp.abs(d)
    sl1 = jnp.where(ad < 1.0, 0.5 * (d * d), ad - 0.5)
    lcode = loc_code_ref[...].astype(jnp.int32)          # 2 pos&coord0, 1 pos, 0 other
    lrow_ok = jax.lax.broadcasted_iota(jnp.int32, (rl, 128), 0) < (loc_rows - block * rl)
    lkeep = jnp.logical_and(lcode > 0, lrow_ok)
    acc_loc[...] += jnp.where(lkeep, sl1, 0.0).reshape(-1, 8, 128).sum(axis=0)
    cnt = jnp.where(jnp.logical_and(lcode > 1, lrow_ok), 1.0, 0.0)
    acc_pos[...] += cnt.reshape(-1, 8, 128).sum(axis=0)

    # ---------------- finalize: one cross-lane reduce per split -----------
    @pl.when(i == n_steps - 1)
    def _finalize():
        clf_s = jnp.sum(acc_clf[...])
        loc_s = jnp.sum(acc_loc[...])
        pos_s = jnp.sum(acc_pos[...])
        sub = jax.lax.broadcasted_iota(jnp.int32, (8, 128), 0)
        ln = jax.lax.broadcasted_iota(jnp.int32, (8, 128), 1)
        row0 = sub == 0
        out_ref[...] = jnp.where(jnp.logical_and(row0, ln == 0), clf_s,
                       jnp.where(jnp.logical_and(row0, ln == 1), loc_s,
                       jnp.where(jnp.logical_and(row0, ln == 2), pos_s, 0.0)))


def focal_loss_pallas(clf_preds, clf_target, loc_preds, loc_target, *,
                      num_classes, alpha=0.25, gamma=2.0,
                      tile_anchors=16384, num_splits=1):
    B, A, C = clf_preds.shape
    assert C == num_classes
    assert 128 % C == 0, "lane-dense packing needs num_classes to divide 128"
    group_c = 128 // C          # anchors per 128-lane clf row
    N = B * A
    assert N > 0

    # Minimal alignment so the big tensors can be viewed as (rows, 128) slabs
    # with rows % 8 == 0 — no chunk-sized padding, and a no-op when N is
    # already aligned.
    pack_mult = _lcm(8 * group_c, 8 * 32)
    Np = _rup(N, pack_mult)
    n_pad = Np - N
    clf_rows = Np // group_c
    loc_rows = Np // 32

    clf_t = clf_target.reshape(N).astype(jnp.int32)
    clf_p = clf_preds.reshape(N, C).astype(jnp.float32)
    loc_p = loc_preds.reshape(N, 4).astype(jnp.float32)
    loc_t = loc_target.reshape(N, 4).astype(jnp.float32)

    # int8 per-lane codes replace the bf16 broadcast-label streams (half the
    # label bytes) and bake all class-id / coord-id compares in, so the kernel
    # needs no lane-iota constants.
    class_id = jnp.arange(1, C + 1, dtype=jnp.int32)
    clf_code = jnp.where(clf_t[:, None] < 0, jnp.int8(-1),
                jnp.where(clf_t[:, None] == class_id[None, :], jnp.int8(1), jnp.int8(0)))
    coord0 = jnp.arange(4, dtype=jnp.int32) == 0
    pos = clf_t > 0
    loc_code = jnp.where(pos[:, None],
                jnp.where(coord0[None, :], jnp.int8(2), jnp.int8(1)), jnp.int8(0))

    if n_pad:
        # TODO(synk): this small alignment pad (< pack_mult anchors) still
        # costs one XLA pad copy; an aligned-prefix kernel + tiny plain-JAX
        # tail would make unaligned N fully zero-copy.
        clf_p = jnp.pad(clf_p, ((0, n_pad), (0, 0)), constant_values=0.5)
        clf_code = jnp.pad(clf_code, ((0, n_pad), (0, 0)), constant_values=-1)
        loc_p = jnp.pad(loc_p, ((0, n_pad), (0, 0)))
        loc_t = jnp.pad(loc_t, ((0, n_pad), (0, 0)))
        loc_code = jnp.pad(loc_code, ((0, n_pad), (0, 0)))

    # Lane-dense views (pure reshapes).
    clf_p_pk = clf_p.reshape(clf_rows, 128)
    clf_code_pk = clf_code.reshape(clf_rows, 128)
    loc_p_pk = loc_p.reshape(loc_rows, 128)
    loc_t_pk = loc_t.reshape(loc_rows, 128)
    loc_code_pk = loc_code.reshape(loc_rows, 128)

    # ------------------------------- tiling -------------------------------
    g = _lcm(32 * group_c, 32 * 32)     # anchors per tile granule (int8 -> 32-row blocks)
    tile_anchors = _rup(max(tile_anchors, 1), g)
    # num_splits: 1 on single-TC v5e/v6e, 2 on v7x; capped so every split has work.
    num_splits = max(1, min(num_splits, _cdiv(Np, g)))

    if num_splits == 1 and Np <= tile_anchors:
        # Small input: single block == the whole packed arrays (full-dim
        # blocks are exempt from (8,128)/(32,128) divisibility).
        steps = 1
        rc, rl = clf_rows, loc_rows
    else:
        target_steps = 4 if num_splits > 1 else 1
        tile_eff = min(tile_anchors,
                       max(g, _rup(_cdiv(Np, num_splits * target_steps), g)))
        steps = _cdiv(Np, num_splits * tile_eff)
        rc = tile_eff // group_c
        rl = tile_eff // 32

    # Clamp block indices so over-provisioned grid points never DMA past the
    # arrays; their contribution is zeroed by the in-kernel row mask.
    max_cb = _cdiv(clf_rows, rc) - 1
    max_lb = _cdiv(loc_rows, rl) - 1

    def clf_map(s, i):
        return (jnp.minimum(s * steps + i, max_cb), 0)

    def loc_map(s, i):
        return (jnp.minimum(s * steps + i, max_lb), 0)

    kernel = functools.partial(_focal_loss_kernel, alpha=float(alpha),
                               gamma=float(gamma),
                               clf_rows=clf_rows, loc_rows=loc_rows)

    out = pl.pallas_call(
        kernel,
        out_shape=jax.ShapeDtypeStruct((num_splits, 8, 128), jnp.float32),
        grid_spec=pltpu.PrefetchScalarGridSpec(
            num_scalar_prefetch=0,
            grid=(num_splits, steps),
            in_specs=[
                pl.BlockSpec((rc, 128), clf_map),   # clf probs  (f32)
                pl.BlockSpec((rc, 128), clf_map),   # clf codes  (int8)
                pl.BlockSpec((rl, 128), loc_map),   # loc preds  (f32)
                pl.BlockSpec((rl, 128), loc_map),   # loc targets(f32)
                pl.BlockSpec((rl, 128), loc_map),   # loc codes  (int8)
            ],
            out_specs=pl.BlockSpec((None, 8, 128), lambda s, i: (s, 0, 0)),
            scratch_shapes=[
                pltpu.VMEM((8, 128), jnp.float32),  # acc_clf
                pltpu.VMEM((8, 128), jnp.float32),  # acc_loc
                pltpu.VMEM((8, 128), jnp.float32),  # acc_pos (num positives)
            ],
        ),
        compiler_params=pltpu.CompilerParams(
            dimension_semantics=("parallel", "arbitrary")),
    )(clf_p_pk, clf_code_pk, loc_p_pk, loc_t_pk, loc_code_pk)

    partial_sums = jnp.sum(out[:, 0, :], axis=0)        # combine per-split rows
    clf_sum = partial_sums[0]
    loc_sum = partial_sums[1]
    num_pos = partial_sums[2]
    denom = jnp.maximum(1.0, num_pos)
    return clf_sum / denom, loc_sum / denom


def focal_loss_reference(clf_preds, clf_target, loc_preds, loc_target,
                         *, num_classes, alpha=0.25, gamma=2.0):
    pos = clf_target > 0
    num_pos = jnp.sum(pos.astype(jnp.float32))

    d = loc_preds - loc_target
    ad = jnp.abs(d)
    sl1 = jnp.where(ad < 1.0, 0.5 * d * d, ad - 0.5)
    loc_loss = jnp.sum(sl1 * pos[..., None].astype(jnp.float32))

    valid = (clf_target >= 0).astype(jnp.float32)
    onehot = jax.nn.one_hot(clf_target, num_classes + 1)[..., 1:]
    x = clf_preds
    log_x = jnp.maximum(jnp.log(x), -100.0)
    log_1mx = jnp.maximum(jnp.log(1.0 - x), -100.0)
    bce = -(onehot * log_x + (1.0 - onehot) * log_1mx)
    pt = x * onehot + (1.0 - x) * (1.0 - onehot)
    w = alpha * onehot + (1.0 - alpha) * (1.0 - onehot)
    fw = w * (1.0 - pt) ** gamma
    clf_loss = jnp.sum(fw * bce * valid[..., None])

    denom = jnp.maximum(1.0, num_pos)
    return clf_loss / denom, loc_loss / denom


if __name__ == "__main__":
    key = jax.random.PRNGKey(0)
    k1, k2, k3, k4, k5, k6, k7, k8 = jax.random.split(key, 8)

    C = 8  # num_classes

    # --- test 1: small demo shapes (single full-array block path) ---------
    B, A = 2, 64
    clf_preds = jax.nn.sigmoid(jax.random.normal(k1, (B, A, C), dtype=jnp.float32))
    clf_target = jax.random.randint(k2, (B, A), -1, C + 1, dtype=jnp.int32)
    loc_preds = jax.random.normal(k3, (B, A, 4), dtype=jnp.float32)
    loc_target = jax.random.normal(k4, (B, A, 4), dtype=jnp.float32)

    clf_loss, loc_loss = focal_loss_pallas(
        clf_preds, clf_target, loc_preds, loc_target, num_classes=C)
    jax.block_until_ready((clf_loss, loc_loss))

    clf_ref, loc_ref = focal_loss_reference(
        clf_preds, clf_target, loc_preds, loc_target, num_classes=C)
    assert jnp.allclose(clf_loss, clf_ref, rtol=1e-5, atol=1e-5), (clf_loss, clf_ref)
    assert jnp.allclose(loc_loss, loc_ref, rtol=1e-5, atol=1e-5), (loc_loss, loc_ref)

    # --- test 2: larger unaligned anchor count; multi-step + 2 splits ------
    B2, A2 = 2, 2350
    clf_preds2 = jax.nn.sigmoid(jax.random.normal(k5, (B2, A2, C), dtype=jnp.float32))
    clf_target2 = jax.random.randint(k6, (B2, A2), -1, C + 1, dtype=jnp.int32)
    loc_preds2 = jax.random.normal(k7, (B2, A2, 4), dtype=jnp.float32)
    loc_target2 = jax.random.normal(k8, (B2, A2, 4), dtype=jnp.float32)

    clf_loss2, loc_loss2 = focal_loss_pallas(
        clf_preds2, clf_target2, loc_preds2, loc_target2, num_classes=C,
        tile_anchors=1024, num_splits=2)
    jax.block_until_ready((clf_loss2, loc_loss2))

    clf_ref2, loc_ref2 = focal_loss_reference(
        clf_preds2, clf_target2, loc_preds2, loc_target2, num_classes=C)
    assert jnp.allclose(clf_loss2, clf_ref2, rtol=5e-4, atol=5e-4), (clf_loss2, clf_ref2)
    assert jnp.allclose(loc_loss2, loc_ref2, rtol=5e-4, atol=5e-4), (loc_loss2, loc_ref2)

    print("KERNEL_OK")
</pallas_src>

<mosaic_0001>
module attributes {stable_mosaic.version = 11 : i64} {
  func.func @_focal_loss_kernel(%arg0: i32, %arg1: i32, %arg2: memref<16x128xf32, #tpu.memory_space<vmem>>, %arg3: memref<16x128xi8, #tpu.memory_space<vmem>>, %arg4: memref<8x128xf32, #tpu.memory_space<vmem>>, %arg5: memref<8x128xf32, #tpu.memory_space<vmem>>, %arg6: memref<8x128xi8, #tpu.memory_space<vmem>>, %arg7: memref<1x8x128xf32, #tpu.memory_space<vmem>>, %arg8: memref<8x128xf32, #tpu.memory_space<vmem>>, %arg9: memref<8x128xf32, #tpu.memory_space<vmem>>, %arg10: memref<8x128xf32, #tpu.memory_space<vmem>>) attributes {dimension_semantics = [#tpu.dimension_semantics<parallel>, #tpu.dimension_semantics<arbitrary>], iteration_bounds = array<i64: 1, 1>, scalar_prefetch = 0 : i64, scratch_operands = 3 : i64, tpu.core_type = #tpu.core_type<tc>, window_params = [{transform_indices = @transform_0, window_bounds = array<i64: 16, 128>}, {transform_indices = @transform_1, window_bounds = array<i64: 16, 128>}, {transform_indices = @transform_2, window_bounds = array<i64: 8, 128>}, {transform_indices = @transform_3, window_bounds = array<i64: 8, 128>}, {transform_indices = @transform_4, window_bounds = array<i64: 8, 128>}, {transform_indices = @transform_5, window_bounds = array<i64: 1, 8, 128>}]} {
    %c1_i32 = arith.constant 1 : i32
    %0 = arith.muli %arg0, %c1_i32 : i32
    %1 = arith.addi %0, %arg1 : i32
    %c0_i32 = arith.constant 0 : i32
    %2 = arith.cmpi eq, %arg1, %c0_i32 : i32
    %3 = arith.extui %2 : i1 to i32
    %c0_i32_0 = arith.constant 0 : i32
    %4 = arith.cmpi ne, %3, %c0_i32_0 : i32
    scf.if %4 {
      %cst_44 = arith.constant 0.000000e+00 : f32
      %82 = vector.broadcast %cst_44 : f32 to vector<8x128xf32>
      %c0_45 = arith.constant 0 : index
      %c0_46 = arith.constant 0 : index
      %83 = vector.load %arg8[%c0_45, %c0_46] : memref<8x128xf32, #tpu.memory_space<vmem>>, vector<8x128xf32>
      tpu.vector_store %arg8[%c0_45, %c0_46], %82 {strides = array<i32>} : memref<8x128xf32, #tpu.memory_space<vmem>>, vector<8x128xf32>,
      %cst_47 = arith.constant 0.000000e+00 : f32
      %84 = vector.broadcast %cst_47 : f32 to vector<8x128xf32>
      %c0_48 = arith.constant 0 : index
      %c0_49 = arith.constant 0 : index
      %85 = vector.load %arg9[%c0_48, %c0_49] : memref<8x128xf32, #tpu.memory_space<vmem>>, vector<8x128xf32>
      tpu.vector_store %arg9[%c0_48, %c0_49], %84 {strides = array<i32>} : memref<8x128xf32, #tpu.memory_space<vmem>>, vector<8x128xf32>,
      %cst_50 = arith.constant 0.000000e+00 : f32
      %86 = vector.broadcast %cst_50 : f32 to vector<8x128xf32>
      %c0_51 = arith.constant 0 : index
      %c0_52 = arith.constant 0 : index
      %87 = vector.load %arg10[%c0_51, %c0_52] : memref<8x128xf32, #tpu.memory_space<vmem>>, vector<8x128xf32>
      tpu.vector_store %arg10[%c0_51, %c0_52], %86 {strides = array<i32>} : memref<8x128xf32, #tpu.memory_space<vmem>>, vector<8x128xf32>,
    } else {
    }
    %c0 = arith.constant 0 : index
    %c0_1 = arith.constant 0 : index
    %5 = vector.load %arg2[%c0, %c0_1] : memref<16x128xf32, #tpu.memory_space<vmem>>, vector<16x128xf32>
    %c0_2 = arith.constant 0 : index
    %c0_3 = arith.constant 0 : index
    %6 = vector.load %arg3[%c0_2, %c0_3] : memref<16x128xi8, #tpu.memory_space<vmem>>, vector<16x128xi8>
    %7 = arith.extsi %6 : vector<16x128xi8> to vector<16x128xi32>
    %c0_i32_4 = arith.constant 0 : i32
    %8 = vector.broadcast %c0_i32_4 : i32 to vector<16x128xi32>
    %9 = arith.cmpi sgt, %7, %8 : vector<16x128xi32>
    %10 = tpu.iota {dimensions = array<i32: 0>} : vector<16x128xi32>
    %c16_i32 = arith.constant 16 : i32
    %11 = arith.muli %1, %c16_i32 : i32
    %c16_i32_5 = arith.constant 16 : i32
    %12 = arith.subi %c16_i32_5, %11 : i32
    %13 = vector.broadcast %12 : i32 to vector<16x128xi32>
    %14 = arith.cmpi slt, %10, %13 : vector<16x128xi32>
    %c0_i32_6 = arith.constant 0 : i32
    %15 = vector.broadcast %c0_i32_6 : i32 to vector<16x128xi32>
    %16 = arith.cmpi sge, %7, %15 : vector<16x128xi32>
    %17 = arith.andi %16, %14 : vector<16x128xi1>
    %cst = arith.constant 1.000000e+00 : f32
    %18 = vector.broadcast %cst : f32 to vector<16x128xf32>
    %19 = arith.subf %18, %5 : vector<16x128xf32>
    %20 = arith.select %9, %5, %19 : vector<16x128xi1>, vector<16x128xf32>
    %21 = math.log %20 : vector<16x128xf32>
    %cst_7 = arith.constant -1.000000e+02 : f32
    %22 = vector.broadcast %cst_7 : f32 to vector<16x128xf32>
    %23 = arith.maximumf %21, %22 : vector<16x128xf32>
    %cst_8 = arith.constant 2.500000e-01 : f32
    %cst_9 = arith.constant 7.500000e-01 : f32
    %24 = vector.broadcast %cst_8 : f32 to vector<16x128xf32>
    %25 = vector.broadcast %cst_9 : f32 to vector<16x128xf32>
    %26 = arith.select %9, %24, %25 : vector<16x128xi1>, vector<16x128xf32>
    %cst_10 = arith.constant 1.000000e+00 : f32
    %27 = vector.broadcast %cst_10 : f32 to vector<16x128xf32>
    %28 = arith.subf %27, %20 : vector<16x128xf32>
    %29 = arith.mulf %28, %28 : vector<16x128xf32>
    %30 = arith.mulf %26, %29 : vector<16x128xf32>
    %31 = arith.mulf %30, %23 : vector<16x128xf32>
    %cst_11 = arith.constant 0.000000e+00 : f32
    %32 = vector.broadcast %cst_11 : f32 to vector<16x128xf32>
    %33 = arith.select %17, %31, %32 : vector<16x128xi1>, vector<16x128xf32>
    %c0_12 = arith.constant 0 : index
    %c0_13 = arith.constant 0 : index
    %34 = vector.load %arg8[%c0_12, %c0_13] : memref<8x128xf32, #tpu.memory_space<vmem>>, vector<8x128xf32>
    %35 = vector.shape_cast %33 : vector<16x128xf32> to vector<2x8x128xf32>
    %cst_14 = arith.constant dense<0.000000e+00> : vector<8x128xf32>
    %36 = vector.multi_reduction <add>, %35, %cst_14 [0] : vector<2x8x128xf32> to vector<8x128xf32>
    %37 = arith.subf %34, %36 : vector<8x128xf32>
    %c0_15 = arith.constant 0 : index
    %c0_16 = arith.constant 0 : index
    %38 = vector.load %arg8[%c0_15, %c0_16] : memref<8x128xf32, #tpu.memory_space<vmem>>, vector<8x128xf32>
    tpu.vector_store %arg8[%c0_15, %c0_16], %37 {strides = array<i32>} : memref<8x128xf32, #tpu.memory_space<vmem>>, vector<8x128xf32>,
    %c0_17 = arith.constant 0 : index
    %c0_18 = arith.constant 0 : index
    %39 = vector.load %arg4[%c0_17, %c0_18] : memref<8x128xf32, #tpu.memory_space<vmem>>, vector<8x128xf32>
    %c0_19 = arith.constant 0 : index
    %c0_20 = arith.constant 0 : index
    %40 = vector.load %arg5[%c0_19, %c0_20] : memref<8x128xf32, #tpu.memory_space<vmem>>, vector<8x128xf32>
    %41 = arith.subf %39, %40 : vector<8x128xf32>
    %42 = math.absf %41 : vector<8x128xf32>
    %cst_21 = arith.constant 1.000000e+00 : f32
    %43 = vector.broadcast %cst_21 : f32 to vector<8x128xf32>
    %44 = arith.cmpf olt, %42, %43 : vector<8x128xf32>
    %45 = arith.mulf %41, %41 : vector<8x128xf32>
    %cst_22 = arith.constant 5.000000e-01 : f32
    %46 = vector.broadcast %cst_22 : f32 to vector<8x128xf32>
    %47 = arith.mulf %46, %45 : vector<8x128xf32>
    %cst_23 = arith.constant 5.000000e-01 : f32
    %48 = vector.broadcast %cst_23 : f32 to vector<8x128xf32>
    %49 = arith.subf %42, %48 : vector<8x128xf32>
    %50 = arith.select %44, %47, %49 : vector<8x128xi1>, vector<8x128xf32>
    %c0_24 = arith.constant 0 : index
    %c0_25 = arith.constant 0 : index
    %51 = vector.load %arg6[%c0_24, %c0_25] : memref<8x128xi8, #tpu.memory_space<vmem>>, vector<8x128xi8>
    %52 = arith.extsi %51 : vector<8x128xi8> to vector<8x128xi32>
    %53 = tpu.iota {dimensions = array<i32: 0>} : vector<8x128xi32>
    %c8_i32 = arith.constant 8 : i32
    %54 = arith.muli %1, %c8_i32 : i32
    %c8_i32_26 = arith.constant 8 : i32
    %55 = arith.subi %c8_i32_26, %54 : i32
    %56 = vector.broadcast %55 : i32 to vector<8x128xi32>
    %57 = arith.cmpi slt, %53, %56 : vector<8x128xi32>
    %c0_i32_27 = arith.constant 0 : i32
    %58 = vector.broadcast %c0_i32_27 : i32 to vector<8x128xi32>
    %59 = arith.cmpi sgt, %52, %58 : vector<8x128xi32>
    %60 = arith.andi %59, %57 : vector<8x128xi1>
    %c0_28 = arith.constant 0 : index
    %c0_29 = arith.constant 0 : index
    %61 = vector.load %arg9[%c0_28, %c0_29] : memref<8x128xf32, #tpu.memory_space<vmem>>, vector<8x128xf32>
    %cst_30 = arith.constant 0.000000e+00 : f32
    %62 = vector.broadcast %cst_30 : f32 to vector<8x128xf32>
    %63 = arith.select %60, %50, %62 : vector<8x128xi1>, vector<8x128xf32>
    %64 = vector.shape_cast %63 : vector<8x128xf32> to vector<1x8x128xf32>
    %cst_31 = arith.constant dense<0.000000e+00> : vector<8x128xf32>
    %65 = vector.multi_reduction <add>, %64, %cst_31 [0] : vector<1x8x128xf32> to vector<8x128xf32>
    %66 = arith.addf %61, %65 : vector<8x128xf32>
    %c0_32 = arith.constant 0 : index
    %c0_33 = arith.constant 0 : index
    %67 = vector.load %arg9[%c0_32, %c0_33] : memref<8x128xf32, #tpu.memory_space<vmem>>, vector<8x128xf32>
    tpu.vector_store %arg9[%c0_32, %c0_33], %66 {strides = array<i32>} : memref<8x128xf32, #tpu.memory_space<vmem>>, vector<8x128xf32>,
    %c1_i32_34 = arith.constant 1 : i32
    %68 = vector.broadcast %c1_i32_34 : i32 to vector<8x128xi32>
    %69 = arith.cmpi sgt, %52, %68 : vector<8x128xi32>
    %70 = arith.andi %69, %57 : vector<8x128xi1>
    %cst_35 = arith.constant 1.000000e+00 : f32
    %cst_36 = arith.constant 0.000000e+00 : f32
    %71 = vector.broadcast %cst_35 : f32 to vector<8x128xf32>
    %72 = vector.broadcast %cst_36 : f32 to vector<8x128xf32>
    %73 = arith.select %70, %71, %72 : vector<8x128xi1>, vector<8x128xf32>
    %c0_37 = arith.constant 0 : index
    %c0_38 = arith.constant 0 : index
    %74 = vector.load %arg10[%c0_37, %c0_38] : memref<8x128xf32, #tpu.memory_space<vmem>>, vector<8x128xf32>
    %75 = vector.shape_cast %73 : vector<8x128xf32> to vector<1x8x128xf32>
    %cst_39 = arith.constant dense<0.000000e+00> : vector<8x128xf32>
    %76 = vector.multi_reduction <add>, %75, %cst_39 [0] : vector<1x8x128xf32> to vector<8x128xf32>
    %77 = arith.addf %74, %76 : vector<8x128xf32>
    %c0_40 = arith.constant 0 : index
    %c0_41 = arith.constant 0 : index
    %78 = vector.load %arg10[%c0_40, %c0_41] : memref<8x128xf32, #tpu.memory_space<vmem>>, vector<8x128xf32>
    tpu.vector_store %arg10[%c0_40, %c0_41], %77 {strides = array<i32>} : memref<8x128xf32, #tpu.memory_space<vmem>>, vector<8x128xf32>,
    %c0_i32_42 = arith.constant 0 : i32
    %79 = arith.cmpi eq, %arg1, %c0_i32_42 : i32
    %80 = arith.extui %79 : i1 to i32
    %c0_i32_43 = arith.constant 0 : i32
    %81 = arith.cmpi ne, %80, %c0_i32_43 : i32
    scf.if %81 {
      %c0_44 = arith.constant 0 : index
      %c0_45 = arith.constant 0 : index
      %82 = vector.load %arg8[%c0_44, %c0_45] : memref<8x128xf32, #tpu.memory_space<vmem>>, vector<8x128xf32>
      %83 = vector.shape_cast %82 : vector<8x128xf32> to vector<1x8x128xf32>
      %cst_46 = arith.constant dense<0.000000e+00> : vector<1xf32>
      %84 = vector.multi_reduction <add>, %83, %cst_46 [1, 2] : vector<1x8x128xf32> to vector<1xf32>
      %85 = vector.shape_cast %84 : vector<1xf32> to vector<1x1x1xf32>
      %86 = vector.extract %85[0, 0, 0] : f32 from vector<1x1x1xf32>
      %c0_47 = arith.constant 0 : index
      %c0_48 = arith.constant 0 : index
      %87 = vector.load %arg9[%c0_47, %c0_48] : memref<8x128xf32, #tpu.memory_space<vmem>>, vector<8x128xf32>
      %88 = vector.shape_cast %87 : vector<8x128xf32> to vector<1x8x128xf32>
      %cst_49 = arith.constant dense<0.000000e+00> : vector<1xf32>
      %89 = vector.multi_reduction <add>, %88, %cst_49 [1, 2] : vector<1x8x128xf32> to vector<1xf32>
      %90 = vector.shape_cast %89 : vector<1xf32> to vector<1x1x1xf32>
      %91 = vector.extract %90[0, 0, 0] : f32 from vector<1x1x1xf32>
      %c0_50 = arith.constant 0 : index
      %c0_51 = arith.constant 0 : index
      %92 = vector.load %arg10[%c0_50, %c0_51] : memref<8x128xf32, #tpu.memory_space<vmem>>, vector<8x128xf32>
      %93 = vector.shape_cast %92 : vector<8x128xf32> to vector<1x8x128xf32>
      %cst_52 = arith.constant dense<0.000000e+00> : vector<1xf32>
      %94 = vector.multi_reduction <add>, %93, %cst_52 [1, 2] : vector<1x8x128xf32> to vector<1xf32>
      %95 = vector.shape_cast %94 : vector<1xf32> to vector<1x1x1xf32>
      %96 = vector.extract %95[0, 0, 0] : f32 from vector<1x1x1xf32>
      %97 = tpu.iota {dimensions = array<i32: 0>} : vector<8x128xi32>
      %98 = tpu.iota {dimensions = array<i32: 1>} : vector<8x128xi32>
      %c0_i32_53 = arith.constant 0 : i32
      %99 = vector.broadcast %c0_i32_53 : i32 to vector<8x128xi32>
      %100 = arith.cmpi eq, %97, %99 : vector<8x128xi32>
      %c0_i32_54 = arith.constant 0 : i32
      %101 = vector.broadcast %c0_i32_54 : i32 to vector<8x128xi32>
      %102 = arith.cmpi eq, %98, %101 : vector<8x128xi32>
      %103 = arith.andi %100, %102 : vector<8x128xi1>
      %c1_i32_55 = arith.constant 1 : i32
      %104 = vector.broadcast %c1_i32_55 : i32 to vector<8x128xi32>
      %105 = arith.cmpi eq, %98, %104 : vector<8x128xi32>
      %106 = arith.andi %100, %105 : vector<8x128xi1>
      %c2_i32 = arith.constant 2 : i32
      %107 = vector.broadcast %c2_i32 : i32 to vector<8x128xi32>
      %108 = arith.cmpi eq, %98, %107 : vector<8x128xi32>
      %109 = arith.andi %100, %108 : vector<8x128xi1>
      %cst_56 = arith.constant 0.000000e+00 : f32
      %110 = vector.broadcast %96 : f32 to vector<8x128xf32>
      %111 = vector.broadcast %cst_56 : f32 to vector<8x128xf32>
      %112 = arith.select %109, %110, %111 : vector<8x128xi1>, vector<8x128xf32>
      %113 = vector.broadcast %91 : f32 to vector<8x128xf32>
      %114 = arith.select %106, %113, %112 : vector<8x128xi1>, vector<8x128xf32>
      %115 = vector.broadcast %86 : f32 to vector<8x128xf32>
      %116 = arith.select %103, %115, %114 : vector<8x128xi1>, vector<8x128xf32>
      %c0_57 = arith.constant 0 : index
      %c0_58 = arith.constant 0 : index
      %c0_59 = arith.constant 0 : index
      %117 = vector.load %arg7[%c0_57, %c0_58, %c0_59] : memref<1x8x128xf32, #tpu.memory_space<vmem>>, vector<1x8x128xf32>
      %118 = vector.shape_cast %117 : vector<1x8x128xf32> to vector<8x128xf32>
      %119 = vector.shape_cast %116 : vector<8x128xf32> to vector<1x8x128xf32>
      tpu.vector_store %arg7[%c0_57, %c0_58, %c0_59], %119 {strides = array<i32>} : memref<1x8x128xf32, #tpu.memory_space<vmem>>, vector<1x8x128xf32>,
    } else {
    }
    return
  }
  func.func @transform_0(%arg0: i32, %arg1: i32) -> (i32, i32) {
    %c1_i32 = arith.constant 1 : i32
    %0 = arith.muli %arg0, %c1_i32 : i32
    %1 = arith.addi %0, %arg1 : i32
    %c0_i32 = arith.constant 0 : i32
    %2 = arith.minsi %1, %c0_i32 : i32
    %c0_i32_0 = arith.constant 0 : i32
    %c0_i32_1 = arith.constant 0 : i32
    return %2, %c0_i32_0 : i32, i32
  }
  func.func @transform_1(%arg0: i32, %arg1: i32) -> (i32, i32) {
    %c1_i32 = arith.constant 1 : i32
    %0 = arith.muli %arg0, %c1_i32 : i32
    %1 = arith.addi %0, %arg1 : i32
    %c0_i32 = arith.constant 0 : i32
    %2 = arith.minsi %1, %c0_i32 : i32
    %c0_i32_0 = arith.constant 0 : i32
    %c0_i32_1 = arith.constant 0 : i32
    return %2, %c0_i32_0 : i32, i32
  }
  func.func @transform_2(%arg0: i32, %arg1: i32) -> (i32, i32) {
    %c1_i32 = arith.constant 1 : i32
    %0 = arith.muli %arg0, %c1_i32 : i32
    %1 = arith.addi %0, %arg1 : i32
    %c0_i32 = arith.constant 0 : i32
    %2 = arith.minsi %1, %c0_i32 : i32
    %c0_i32_0 = arith.constant 0 : i32
    %c0_i32_1 = arith.constant 0 : i32
    return %2, %c0_i32_0 : i32, i32
  }
  func.func @transform_3(%arg0: i32, %arg1: i32) -> (i32, i32) {
    %c1_i32 = arith.constant 1 : i32
    %0 = arith.muli %arg0, %c1_i32 : i32
    %1 = arith.addi %0, %arg1 : i32
    %c0_i32 = arith.constant 0 : i32
    %2 = arith.minsi %1, %c0_i32 : i32
    %c0_i32_0 = arith.constant 0 : i32
    %c0_i32_1 = arith.constant 0 : i32
    return %2, %c0_i32_0 : i32, i32
  }
  func.func @transform_4(%arg0: i32, %arg1: i32) -> (i32, i32) {
    %c1_i32 = arith.constant 1 : i32
    %0 = arith.muli %arg0, %c1_i32 : i32
    %1 = arith.addi %0, %arg1 : i32
    %c0_i32 = arith.constant 0 : i32
    %2 = arith.minsi %1, %c0_i32 : i32
    %c0_i32_0 = arith.constant 0 : i32
    %c0_i32_1 = arith.constant 0 : i32
    return %2, %c0_i32_0 : i32, i32
  }
  func.func @transform_5(%arg0: i32, %arg1: i32) -> (i32, i32, i32) {
    %c0_i32 = arith.constant 0 : i32
    %c0_i32_0 = arith.constant 0 : i32
    %c0_i32_1 = arith.constant 0 : i32
    return %arg0, %c0_i32, %c0_i32_0 : i32, i32, i32
  }
}

</mosaic_0001>

<llo_original>
// kernel: tpu_custom_call.1
$region0: #{tpu_custom_call.1}
  #allocation0 [shape = 'u32[]', space=smem, size = 0x4, offset = 0x4, fixed_abs, tag = 'smem constant byte address 0x4 - core index']
  #allocation1 [shape = 'u32[144,128]{1,0:T(1,128)}', space=vmem, size = 0x12000, scoped, tag = 'internal scratch']
  #allocation2 [shape = 'f32[8,128]{1,0:T(8,128)}', space=vmem, size = 0x1000, scoped, tag = 'scratch operand']
  #allocation3 [shape = 'f32[8,128]{1,0:T(8,128)}', space=vmem, size = 0x1000, scoped, tag = 'scratch operand']
  #allocation4 [shape = 'f32[8,128]{1,0:T(8,128)}', space=vmem, size = 0x1000, scoped, tag = 'scratch operand']
  %s0 = inlined_call_operand.hbm [shape: f32[16,128], index: 0, kind: input, shape index: {}]
  %s1 = inlined_call_operand.hbm [shape: s8[16,128], index: 1, kind: input, shape index: {}]
  %s2 = inlined_call_operand.hbm [shape: f32[8,128], index: 2, kind: input, shape index: {}]
  %s3 = inlined_call_operand.vmem [shape: f32[8,128], index: 3, kind: input, shape index: {}]
  %s4 = inlined_call_operand.vmem [shape: s8[8,128], index: 4, kind: input, shape index: {}]
  %s5 = inlined_call_operand.hbm [shape: f32[1,8,128], index: 5, kind: output, shape index: {}]
  %s6 = sld [smem:[#allocation0]]
  $region50: #{tpu_custom_call.1} parent=0
    _
  %s8 = ssub.s32 1, %s6
  %s9 = scalar_select 0, %s8, %s6
  $region1: #{tpu_custom_call.1} parent=0
    #allocation5 [shape = 'u8[8192]{0}', space=vmem, size = 0x2000, scoped, tag = 'input window, operand 0, single buffered']
    #allocation6 [shape = 's32[1]{0}', space=sflag, size = 0x4, scoped, tag = 'scoped memory for tpu_custom_call.1']
    #allocation7 [shape = 's32[1]{0}', space=sflag, size = 0x4, scoped, tag = 'scoped memory for tpu_custom_call.1']
    #allocation8 [shape = 'u8[2048]{0}', space=vmem, size = 0x800, scoped, tag = 'input window, operand 1, single buffered']
    #allocation9 [shape = 's32[1]{0}', space=sflag, size = 0x4, scoped, tag = 'scoped memory for tpu_custom_call.1']
    #allocation10 [shape = 'u8[4096]{0}', space=vmem, size = 0x1000, scoped, tag = 'input window, operand 2, single buffered']
    #allocation11 [shape = 'u8[4096]{0}', space=vmem, size = 0x1000, scoped, tag = 'output window, operand 0, single buffered']
    %10 = vsyncpa [#allocation6], 0
    %11 = vsyncpa [#allocation9], 0
    %12 = vsyncpa [#allocation7], 0
    // Predicated region
    $region2: #{tpu_custom_call.1} parent=1 // pred_check
      _
    $region3: #{tpu_custom_call.1} parent=1 // pred_check_branch
      %14 = sbr.rel (0) target = $region5
    $region4: #{tpu_custom_call.1} parent=1 // pred_region
      %s15 = sadd.s32 0, 0
      %p16 = scmp.lt.s32.totalorder %s15, 0
      %s17 = scalar_select %p16, %s15, 0
      %s18 = smul.u32 2, %s17
      %s20 = ssub.s32 256, 256
      %21 = vsyncadd [#allocation6], %s20
      %s22 = smul.addr %s18, 128
      %s23 = scalar_lea.hbm %s0, %s22
      %s24 = sshll.u32 [#allocation5], 4
      %s25 = int_to_ptr.vmem [resolvable:$true] %s24
      %30 = dma.hbm_to_vmem [thread:$0]  %s23, 256, %s25, [#allocation6], 128, 128, 8
    $region5: #{tpu_custom_call.1} parent=1 // pred_fallthru
      _
    // Predicated region
    $region6: #{tpu_custom_call.1} parent=1 // pred_check
      _
    $region7: #{tpu_custom_call.1} parent=1 // pred_check_branch
      %32 = sbr.rel (0) target = $region9
    $region8: #{tpu_custom_call.1} parent=1 // pred_region
      %s33 = sadd.s32 0, 0
      %p34 = scmp.lt.s32.totalorder %s33, 0
      %s35 = scalar_select %p34, %s33, 0
      %s36 = smul.u32 2, %s35
      %s38 = ssub.s32 64, 64
      %39 = vsyncadd [#allocation9], %s38
      %s40 = smul.addr %s36, 32
      %s41 = scalar_lea.hbm %s1, %s40
      %s42 = sshll.u32 [#allocation8], 4
      %s43 = int_to_ptr.vmem [resolvable:$true] %s42
      %48 = dma.hbm_to_vmem [thread:$0]  %s41, 64, %s43, [#allocation9], 32, 32, 2
    $region9: #{tpu_custom_call.1} parent=1 // pred_fallthru
      _
    // Predicated region
    $region10: #{tpu_custom_call.1} parent=1 // pred_check
      _
    $region11: #{tpu_custom_call.1} parent=1 // pred_check_branch
      %50 = sbr.rel (0) target = $region13
    $region12: #{tpu_custom_call.1} parent=1 // pred_region
      %s51 = sadd.s32 0, 0
      %p52 = scmp.lt.s32.totalorder %s51, 0
      %s53 = scalar_select %p52, %s51, 0
      %s55 = ssub.s32 128, 128
      %56 = vsyncadd [#allocation9], %s55
      %s57 = smul.addr %s53, 128
      %s58 = scalar_lea.hbm %s2, %s57
      %s60 = sshll.u32 [#allocation10], 4
      %s61 = int_to_ptr.vmem [resolvable:$true] %s60
      %63 = dma.hbm_to_vmem [thread:$0]  %s58, 128, %s61, [#allocation9]
    $region13: #{tpu_custom_call.1} parent=1 // pred_fallthru
      _
    // Predicated region
    $region14: #{tpu_custom_call.1} parent=1 // pred_check
      _
    $region15: #{tpu_custom_call.1} parent=1 // pred_check_branch
      %65 = sbr.rel (0) target = $region17
    $region16: #{tpu_custom_call.1} parent=1 // pred_region
      %s66 = sadd.s32 0, 0
      %p67 = scmp.lt.s32.totalorder %s66, 0
      %s68 = scalar_select %p67, %s66, 0
      %p69 = scmp.lt.s32.totalorder %s68, 0
      %s70 = scalar_select %p69, %s68, 0
      %s71 = smul.addr %s70, 8
      %s72 = scalar_lea.vmem %s3, %s71
      %s73 = sadd.s32 0, 0
      %p74 = scmp.lt.s32.totalorder %s73, 0
      %s75 = scalar_select %p74, %s73, 0
    $region17: #{tpu_custom_call.1} parent=1 // pred_fallthru
      _
    // Predicated region
    $region18: #{tpu_custom_call.1} parent=1 // pred_check
      _
    $region19: #{tpu_custom_call.1} parent=1 // pred_check_branch
      %77 = sbr.rel (0) target = $region21
    $region20: #{tpu_custom_call.1} parent=1 // pred_region
      %s78 = sadd.s32 0, 0
      %p79 = scmp.lt.s32.totalorder %s78, 0
      %s80 = scalar_select %p79, %s78, 0
      %p81 = scmp.lt.s32.totalorder %s80, 0
      %s82 = scalar_select %p81, %s80, 0
      %s83 = smul.addr %s82, 2
      %s84 = scalar_lea.vmem %s4, %s83
      %s85 = sadd.s32 0, 0
      %p86 = scmp.lt.s32.totalorder %s85, 0
      %s87 = scalar_select %p86, %s85, 0
    $region21: #{tpu_custom_call.1} parent=1 // pred_fallthru
      _
    // Predicated region
    $region22: #{tpu_custom_call.1} parent=1 // pred_check
      _
    $region23: #{tpu_custom_call.1} parent=1 // pred_check_branch
      %89 = sbr.rel (0) target = $region25
    $region24: #{tpu_custom_call.1} parent=1 // pred_region
      %90 = dma.done [#allocation6], 256
    $region25: #{tpu_custom_call.1} parent=1 // pred_fallthru
      _
    // Predicated region
    $region26: #{tpu_custom_call.1} parent=1 // pred_check
      _
    $region27: #{tpu_custom_call.1} parent=1 // pred_check_branch
      %92 = sbr.rel (0) target = $region29
    $region28: #{tpu_custom_call.1} parent=1 // pred_region
      %93 = dma.done [#allocation9], 64
    $region29: #{tpu_custom_call.1} parent=1 // pred_fallthru
      _
    // Predicated region
    $region30: #{tpu_custom_call.1} parent=1 // pred_check
      _
    $region31: #{tpu_custom_call.1} parent=1 // pred_check_branch
      %95 = sbr.rel (0) target = $region33
    $region32: #{tpu_custom_call.1} parent=1 // pred_region
      %96 = dma.done [#allocation9], 128
    $region33: #{tpu_custom_call.1} parent=1 // pred_fallthru
      _
    %s97 = sadd.s32 0, 0
    %p98 = scmp.lt.s32.totalorder %s97, 0
    %s99 = scalar_select %p98, %s97, 0
    %p100 = scmp.lt.s32.totalorder %s99, 0
    %s101 = scalar_select %p100, %s99, 0
    %s102 = smul.addr %s101, 8
    %s103 = scalar_lea.vmem %s3, %s102
    %s104 = sadd.s32 0, 0
    %p105 = scmp.lt.s32.totalorder %s104, 0
    %s106 = scalar_select %p105, %s104, 0
    %p107 = scmp.lt.s32.totalorder %s106, 0
    %s108 = scalar_select %p107, %s106, 0
    %s109 = smul.addr %s108, 2
    %s110 = scalar_lea.vmem %s4, %s109
    %s111 = sadd.s32 0, 0
    %p112 = scmp.lt.s32.totalorder %s111, 0
    %s113 = scalar_select %p112, %s111, 0
    %s114 = smul.u32 2, %s113
    %s115 = sadd.s32 0, 0
    %p116 = scmp.lt.s32.totalorder %s115, 0
    %s117 = scalar_select %p116, %s115, 0
    %s118 = smul.u32 2, %s117
    %s119 = sadd.s32 0, 0
    %p120 = scmp.lt.s32.totalorder %s119, 0
    %s121 = scalar_select %p120, %s119, 0
    %s122 = sadd.s32 0, 0
    %p123 = scmp.lt.s32.totalorder %s122, 0
    %s124 = scalar_select %p123, %s122, 0
    %p125 = scmp.lt.s32.totalorder %s124, 0
    %s126 = scalar_select %p125, %s124, 0
    %s127 = smul.addr %s126, 8
    %s128 = scalar_lea.vmem %s3, %s127
    %s129 = sadd.s32 0, 0
    %p130 = scmp.lt.s32.totalorder %s129, 0
    %s131 = scalar_select %p130, %s129, 0
    %s132 = sadd.s32 0, 0
    %p133 = scmp.lt.s32.totalorder %s132, 0
    %s134 = scalar_select %p133, %s132, 0
    %p135 = scmp.lt.s32.totalorder %s134, 0
    %s136 = scalar_select %p135, %s134, 0
    %s137 = smul.addr %s136, 2
    %s138 = scalar_lea.vmem %s4, %s137
    %s139 = sadd.s32 0, 0
    %p140 = scmp.lt.s32.totalorder %s139, 0
    %s141 = scalar_select %p140, %s139, 0
    %s142 = sadd.s32 0, 0
    %p143 = scmp.eq.s32.totalorder 0, 0
    // Predicated region
    $region34: #{tpu_custom_call.1} parent=1 // pred_check
      %p144 = pneg %p143
    $region35: #{tpu_custom_call.1} parent=1 // pred_check_branch
      %146 = sbr.rel (%p144) target = $region37
    $region36: #{tpu_custom_call.1} parent=1 // pred_region
      %147 = vst [vmem:[#allocation2] sm:$0xff] 0.0
      %148 = vst [vmem:[#allocation3] sm:$0xff] 0.0
      %149 = vst [vmem:[#allocation4] sm:$0xff] 0.0
    $region37: #{tpu_custom_call.1} parent=1 // pred_fallthru
      _
    %v150 = vld [vmem:[#allocation5] sm:$0xff]
    %v151 = vld [vmem:[#allocation5 + $0x8] sm:$0xff]
    %v152 = vld [vmem:[#allocation8] sm:$0x3]
    %v153 = vld [vmem:[#allocation8 + $0x2] sm:$0x3]
    %v154 = vunpack.c.0.s8 %v152
    %v155 = vunpack.c.0.s8 %v153
    %vm156 = vcmp.gt.s32.totalorder %v154, 0
    %vm157 = vcmp.gt.s32.totalorder %v155, 0
    %v158 = vlaneseq
    %v159 = vshrl.u32 %v158, 7
    %v160 = vadd.s32 %v159, 8
    %s161 = smul.u32 %s142, 16
    %s162 = ssub.s32 16, %s161
    %v163 = vstv %s162
    %vm164 = vcmp.lt.s32.totalorder %v159, %v163
    %vm165 = vcmp.lt.s32.totalorder %v160, %v163
    %vm166 = vcmp.ge.s32.totalorder %v154, 0
    %vm167 = vcmp.ge.s32.totalorder %v155, 0
    %vm168 = vmand %vm166, %vm164
    %vm169 = vmand %vm167, %vm165
    %v170 = vsub.f32 1.0, %v150
    %v171 = vsub.f32 1.0, %v151
    %v172 = vsel %vm156, %v150, %v170
    %v173 = vsel %vm157, %v151, %v171
    %v174 = vlog2.pop %v172
    %v175 = vmul.f32 %v174, 0.6931472
    %v176 = vlog2.pop %v173
    %v177 = vmul.f32 %v176, 0.6931472
    %v178 = vmax.f32 %v175, -100.0
    %v179 = vmax.f32 %v177, -100.0
    %v180 = vsel %vm156, 0.25, 0.75
    %v181 = vsel %vm157, 0.25, 0.75
    %v182 = vsub.f32 1.0, %v172
    %v183 = vsub.f32 1.0, %v173
    %v184 = vmul.f32 %v182, %v182
    %v185 = vmul.f32 %v183, %v183
    %v186 = vmul.f32 %v180, %v184
    %v187 = vmul.f32 %v181, %v185
    %v188 = vmul.f32 %v186, %v178
    %v189 = vmul.f32 %v187, %v179
    %v190 = vsel %vm168, %v188, 0.0
    %v191 = vsel %vm169, %v189, 0.0
    %v192 = vld [vmem:[#allocation2] sm:$0xff]
    %v193 = vadd.f32 %v190, %v191
    %v194 = vsub.f32 %v192, %v193
    %195 = vst [vmem:[#allocation2] sm:$0xff] %v194
    %v196 = vld [vmem:[#allocation10] sm:$0xff]
    %v197 = vld [vmem:[%s128] sm:$0xff]
    %v198 = vsub.f32 %v196, %v197
    %v199 = vand.u32 2147483647, %v198
    %vm200 = vcmp.lt.f32.partialorder %v199, 1.0
    %v201 = vmul.f32 %v198, %v198
    %v202 = vmul.f32 %v201, 0.5
    %v203 = vsub.f32 %v199, 0.5
    %v204 = vsel %vm200, %v202, %v203
    %v205 = vld [vmem:[%s138] sm:$0x3]
    %v206 = vunpack.c.0.s8 %v205
    %s207 = smul.u32 %s142, 8
    %s208 = ssub.s32 8, %s207
    %v209 = vstv %s208
    %vm210 = vcmp.lt.s32.totalorder %v159, %v209
    %vm211 = vcmp.gt.s32.totalorder %v206, 0
    %vm212 = vmand %vm211, %vm210
    %v213 = vld [vmem:[#allocation3] sm:$0xff]
    %v214 = vsel %vm212, %v204, 0.0
    %v215 = vadd.f32 %v214, 0.0
    %v216 = vadd.f32 %v213, %v215
    %217 = vst [vmem:[#allocation3] sm:$0xff] %v216
    %vm218 = vcmp.gt.s32.totalorder %v206, 1
    %vm219 = vmand %vm218, %vm210
    %v220 = vsel %vm219, 1.0, 0.0
    %v221 = vld [vmem:[#allocation4] sm:$0xff]
    %v222 = vadd.f32 %v220, 0.0
    %v223 = vadd.f32 %v221, %v222
    %224 = vst [vmem:[#allocation4] sm:$0xff] %v223
    // Predicated region
    $region38: #{tpu_custom_call.1} parent=1 // pred_check
      %p225 = pneg %p143
    $region39: #{tpu_custom_call.1} parent=1 // pred_check_branch
      %227 = sbr.rel (%p225) target = $region41
    $region40: #{tpu_custom_call.1} parent=1 // pred_region
      %v228 = vld [vmem:[#allocation2] sm:$0xff]
      %229 = vadd.xlane.f32.xlu0 %v228
      %v230 = vpop.xlane.xlu0 %229
      %v231 = vrot.slane %v230, 4
      %v232 = vadd.f32 %v230, %v231
      %v233 = vrot.slane %v232, 2
      %v234 = vadd.f32 %v232, %v233
      %v235 = vrot.slane %v234, 1
      %v236 = vadd.f32 %v234, %v235
      %s237 = vtos %v236
      %v238 = vld [vmem:[#allocation3] sm:$0xff]
      %239 = vadd.xlane.f32.xlu0 %v238
      %v240 = vpop.xlane.xlu0 %239
      %v241 = vrot.slane %v240, 4
      %v242 = vadd.f32 %v240, %v241
      %v243 = vrot.slane %v242, 2
      %v244 = vadd.f32 %v242, %v243
      %v245 = vrot.slane %v244, 1
      %v246 = vadd.f32 %v244, %v245
      %s247 = vtos %v246
      %v248 = vld [vmem:[#allocation4] sm:$0xff]
      %249 = vadd.xlane.f32.xlu0 %v248
      %v250 = vpop.xlane.xlu0 %249
      %v251 = vrot.slane %v250, 4
      %v252 = vadd.f32 %v250, %v251
      %v253 = vrot.slane %v252, 2
      %v254 = vadd.f32 %v252, %v253
      %v255 = vrot.slane %v254, 1
      %v256 = vadd.f32 %v254, %v255
      %s257 = vtos %v256
      %v258 = vlaneseq
      %v259 = vand.u32 %v258, 127
      %vm260 = vcmp.eq.s32.totalorder %v159, 0
      %vm261 = vcmp.eq.s32.totalorder %v259, 0
      %vm262 = vmand %vm260, %vm261
      %vm263 = vcmp.eq.s32.totalorder %v259, 1
      %vm264 = vmand %vm260, %vm263
      %vm265 = vcmp.eq.s32.totalorder %v259, 2
      %vm266 = vmand %vm260, %vm265
      %v267 = vstv %s257
      %v268 = vsel %vm266, %v267, 0.0
      %v269 = vstv %s247
      %v270 = vsel %vm264, %v269, %v268
      %v271 = vstv %s237
      %v272 = vsel %vm262, %v271, %v270
      %273 = vst [vmem:[#allocation11] sm:$0xff] %v272
    $region41: #{tpu_custom_call.1} parent=1 // pred_fallthru
      _
    // Predicated region
    $region42: #{tpu_custom_call.1} parent=1 // pred_check
      _
    $region43: #{tpu_custom_call.1} parent=1 // pred_check_branch
      %275 = sbr.rel (0) target = $region45
    $region44: #{tpu_custom_call.1} parent=1 // pred_region
      %s277 = ssub.s32 128, 128
      %278 = vsyncadd [#allocation7], %s277
      %s280 = sshll.u32 [#allocation11], 4
      %s281 = int_to_ptr.vmem [resolvable:$true] %s280
      %283 = dma.vmem_to_hbm [thread:$0]  %s281, 128, %s5, [#allocation7]
    $region45: #{tpu_custom_call.1} parent=1 // pred_fallthru
      _
    // Predicated region
    $region46: #{tpu_custom_call.1} parent=1 // pred_check
      _
    $region47: #{tpu_custom_call.1} parent=1 // pred_check_branch
      %285 = sbr.rel (0) target = $region49
    $region48: #{tpu_custom_call.1} parent=1 // pred_region
      %286 = dma.done [#allocation7], 128
    $region49: #{tpu_custom_call.1} parent=1 // pred_fallthru
      _
    %287 = vsyncpa [#allocation6], 1
    %288 = vsyncpa [#allocation9], 1
    %289 = vsyncpa [#allocation7], 1

</llo_original>
